<compile_context>
chip_gen: v7x
topology: tpu7x:2x2x1
jax: 0.10.0
libtpu: 0.0.40
codegen_flags: <defaults>
</compile_context>

<pallas_src>
import numpy as np

import jax
import jax.numpy as jnp
from jax import lax
from jax.experimental import pallas as pl
from jax.experimental.pallas import tpu as pltpu


def _sobel_kernel(x_ref, o_ref):
    """x_ref: (P, H, W) in native dtype; o_ref: (P, 2, H, W) in out dtype."""
    P, H, W = x_ref.shape

    # Edge masks: built once per grid step from narrow iotas, reused by all
    # P planes and by both the t- and s-shifts.
    row = lax.broadcasted_iota(jnp.int32, (H, 1), 0)
    col = lax.broadcasted_iota(jnp.int32, (1, W), 1)
    is_top = row == 0
    is_bot = row == H - 1
    is_left = col == 0
    is_right = col == W - 1

    for p in range(P):  # static unroll; P is kept small by the wrapper
        x = x_ref[p].astype(jnp.float32)  # in-kernel cast (no HBM astype pass)

        # Row-shifted copies; roll wrap-around is masked to zero, which
        # reproduces conv2d's zero padding with no HBM-level pad.
        top = jnp.where(is_top, 0.0, pltpu.roll(x, shift=1, axis=0))      # x[i-1, j]
        bot = jnp.where(is_bot, 0.0, pltpu.roll(x, shift=H - 1, axis=0))  # x[i+1, j]

        t = top + 2.0 * x + bot   # vertical smoothing  -> feeds Gx
        s = bot - top             # vertical difference -> feeds Gy

        t_r = jnp.where(is_right, 0.0, pltpu.roll(t, shift=W - 1, axis=1))  # t[i, j+1]
        t_l = jnp.where(is_left, 0.0, pltpu.roll(t, shift=1, axis=1))       # t[i, j-1]
        s_r = jnp.where(is_right, 0.0, pltpu.roll(s, shift=W - 1, axis=1))  # s[i, j+1]
        s_l = jnp.where(is_left, 0.0, pltpu.roll(s, shift=1, axis=1))       # s[i, j-1]

        o_ref[p, 0] = (t_r - t_l).astype(o_ref.dtype)            # Gx
        o_ref[p, 1] = (s_l + 2.0 * s + s_r).astype(o_ref.dtype)  # Gy


def _plane_chunk(n_planes, bytes_per_plane, *, max_unroll=8, vmem_target=8 << 20):
    """Largest divisor of n_planes that is <= max_unroll and whose
    double-buffered (in + out) footprint stays under vmem_target."""
    best = 1
    for p in range(1, min(n_planes, max_unroll) + 1):
        if n_planes % p == 0 and 2 * p * bytes_per_plane <= vmem_target:
            best = p
    return best


def sobel(x, out_dtype=jnp.float32):
    """x: (B, 3, H, W) float image in [0, 1]. Returns (B, 6, H, W).

    Channel order matches the PyTorch module:
    [Gx(R), Gy(R), Gx(G), Gy(G), Gx(B), Gy(B)].
    """
    B, C, H, W = x.shape
    out_dtype = np.dtype(out_dtype)
    n_planes = B * C

    # Free (contiguity-preserving) reshape; dtype untouched — the cast happens
    # inside the kernel, so no separate HBM astype pass.
    planes = x.reshape(n_planes, H, W)

    in_bytes = H * W * planes.dtype.itemsize
    out_bytes = 2 * H * W * out_dtype.itemsize
    P = _plane_chunk(n_planes, in_bytes + out_bytes)

    # Double-buffered input + 2-channel output per step.
    step_bytes = 2 * P * (in_bytes + out_bytes)
    vmem_limit = None
    if step_bytes > (12 << 20):
        # Only reachable with P == 1 (a single plane overshoots the default
        # scoped VMEM, e.g. v5e's 16 MiB): raise the scoped limit.
        vmem_limit = min(step_bytes + (16 << 20), 100 << 20)

    cost = pl.CostEstimate(
        flops=14 * n_planes * H * W,
        transcendentals=0,
        bytes_accessed=n_planes * (in_bytes + out_bytes),
    )

    out = pl.pallas_call(
        _sobel_kernel,
        out_shape=jax.ShapeDtypeStruct((n_planes, 2, H, W), out_dtype),
        grid_spec=pltpu.PrefetchScalarGridSpec(
            num_scalar_prefetch=0,
            grid=(n_planes // P,),
            in_specs=[pl.BlockSpec((P, H, W), lambda c: (c, 0, 0))],
            out_specs=pl.BlockSpec((P, 2, H, W), lambda c: (c, 0, 0, 0)),
        ),
        compiler_params=pltpu.CompilerParams(
            dimension_semantics=("parallel",),  # plane chunks are independent
            vmem_limit_bytes=vmem_limit,
        ),
        cost_estimate=cost,
    )(planes)

    # (B*C, 2, H, W) -> (B, 2*C, H, W): free reshape, matches PyTorch ordering.
    return out.reshape(B, 2 * C, H, W)


if __name__ == "__main__":
    key = jax.random.PRNGKey(0)
    x = jax.random.uniform(key, (2, 3, 16, 16), jnp.float32)  # RGB image in [0, 1]

    y = jax.jit(sobel)(x)
    jax.block_until_ready(y)
    assert y.shape == (2, 6, 16, 16) and y.dtype == jnp.float32

    # Independent reference: the exact grouped conv the PyTorch module performs.
    k = jnp.array([[[-1., 0., 1.], [-2., 0., 2.], [-1., 0., 1.]],
                   [[-1., -2., -1.], [0., 0., 0.], [1., 2., 1.]]], jnp.float32)
    k = jnp.tile(k[:, None], (3, 1, 1, 1))  # (6, 1, 3, 3)
    ref = lax.conv_general_dilated(
        x, k, window_strides=(1, 1), padding=((1, 1), (1, 1)),
        dimension_numbers=("NCHW", "OIHW", "NCHW"), feature_group_count=3)
    assert jnp.allclose(y, ref, atol=1e-5, rtol=1e-5), float(jnp.max(jnp.abs(y - ref)))

    # Optional bf16-output path (halves HBM writes on the mem-bound v5e/v6e).
    y_bf16 = jax.jit(lambda a: sobel(a, out_dtype=jnp.bfloat16))(x)
    jax.block_until_ready(y_bf16)
    assert y_bf16.shape == (2, 6, 16, 16) and y_bf16.dtype == jnp.bfloat16
    assert jnp.allclose(y_bf16.astype(jnp.float32), ref, atol=5e-2)

    print("KERNEL_OK")
</pallas_src>

<mosaic_0001>
module attributes {stable_mosaic.version = 11 : i64} {
  func.func @_sobel_kernel(%arg0: i32, %arg1: memref<6x16x16xf32, #tpu.memory_space<vmem>>, %arg2: memref<6x2x16x16xf32, #tpu.memory_space<vmem>>) attributes {dimension_semantics = [#tpu.dimension_semantics<parallel>], iteration_bounds = array<i64: 1>, scalar_prefetch = 0 : i64, scratch_operands = 0 : i64, tpu.core_type = #tpu.core_type<tc>, window_params = [{transform_indices = @transform_0, window_bounds = array<i64: 6, 16, 16>}, {transform_indices = @transform_1, window_bounds = array<i64: 6, 2, 16, 16>}]} {
    %0 = tpu.iota {dimensions = array<i32: 0>} : vector<16x1xi32>
    %1 = tpu.iota {dimensions = array<i32: 1>} : vector<1x16xi32>
    %c0_i32 = arith.constant 0 : i32
    %2 = vector.broadcast %c0_i32 : i32 to vector<16x1xi32>
    %3 = arith.cmpi eq, %0, %2 : vector<16x1xi32>
    %c15_i32 = arith.constant 15 : i32
    %4 = vector.broadcast %c15_i32 : i32 to vector<16x1xi32>
    %5 = arith.cmpi eq, %0, %4 : vector<16x1xi32>
    %c0_i32_0 = arith.constant 0 : i32
    %6 = vector.broadcast %c0_i32_0 : i32 to vector<1x16xi32>
    %7 = arith.cmpi eq, %1, %6 : vector<1x16xi32>
    %c15_i32_1 = arith.constant 15 : i32
    %8 = vector.broadcast %c15_i32_1 : i32 to vector<1x16xi32>
    %9 = arith.cmpi eq, %1, %8 : vector<1x16xi32>
    %c0 = arith.constant 0 : index
    %c0_2 = arith.constant 0 : index
    %c0_3 = arith.constant 0 : index
    %10 = vector.load %arg1[%c0, %c0_2, %c0_3] : memref<6x16x16xf32, #tpu.memory_space<vmem>>, vector<1x16x16xf32>
    %11 = vector.shape_cast %10 : vector<1x16x16xf32> to vector<16x16xf32>
    %c1_i32 = arith.constant 1 : i32
    %12 = tpu.dynamic_rotate %11 by %c1_i32 dim 0 : vector<16x16xf32>, i32 -> vector<16x16xf32>
    %cst = arith.constant 0.000000e+00 : f32
    %13 = vector.shape_cast %3 : vector<16x1xi1> to vector<16x1xi1>
    %14 = vector.broadcast %13 : vector<16x1xi1> to vector<16x16xi1>
    %15 = vector.broadcast %cst : f32 to vector<16x16xf32>
    %16 = arith.select %14, %15, %12 : vector<16x16xi1>, vector<16x16xf32>
    %c15_i32_4 = arith.constant 15 : i32
    %17 = tpu.dynamic_rotate %11 by %c15_i32_4 dim 0 : vector<16x16xf32>, i32 -> vector<16x16xf32>
    %cst_5 = arith.constant 0.000000e+00 : f32
    %18 = vector.shape_cast %5 : vector<16x1xi1> to vector<16x1xi1>
    %19 = vector.broadcast %18 : vector<16x1xi1> to vector<16x16xi1>
    %20 = vector.broadcast %cst_5 : f32 to vector<16x16xf32>
    %21 = arith.select %19, %20, %17 : vector<16x16xi1>, vector<16x16xf32>
    %cst_6 = arith.constant 2.000000e+00 : f32
    %22 = vector.broadcast %cst_6 : f32 to vector<16x16xf32>
    %23 = arith.mulf %22, %11 : vector<16x16xf32>
    %24 = arith.addf %16, %23 : vector<16x16xf32>
    %25 = arith.addf %24, %21 : vector<16x16xf32>
    %26 = arith.subf %21, %16 : vector<16x16xf32>
    %c15_i32_7 = arith.constant 15 : i32
    %27 = tpu.dynamic_rotate %25 by %c15_i32_7 dim 1 : vector<16x16xf32>, i32 -> vector<16x16xf32>
    %cst_8 = arith.constant 0.000000e+00 : f32
    %28 = vector.shape_cast %9 : vector<1x16xi1> to vector<1x16xi1>
    %29 = vector.broadcast %28 : vector<1x16xi1> to vector<16x16xi1>
    %30 = vector.broadcast %cst_8 : f32 to vector<16x16xf32>
    %31 = arith.select %29, %30, %27 : vector<16x16xi1>, vector<16x16xf32>
    %c1_i32_9 = arith.constant 1 : i32
    %32 = tpu.dynamic_rotate %25 by %c1_i32_9 dim 1 : vector<16x16xf32>, i32 -> vector<16x16xf32>
    %cst_10 = arith.constant 0.000000e+00 : f32
    %33 = vector.shape_cast %7 : vector<1x16xi1> to vector<1x16xi1>
    %34 = vector.broadcast %33 : vector<1x16xi1> to vector<16x16xi1>
    %35 = vector.broadcast %cst_10 : f32 to vector<16x16xf32>
    %36 = arith.select %34, %35, %32 : vector<16x16xi1>, vector<16x16xf32>
    %c15_i32_11 = arith.constant 15 : i32
    %37 = tpu.dynamic_rotate %26 by %c15_i32_11 dim 1 : vector<16x16xf32>, i32 -> vector<16x16xf32>
    %cst_12 = arith.constant 0.000000e+00 : f32
    %38 = vector.shape_cast %9 : vector<1x16xi1> to vector<1x16xi1>
    %39 = vector.broadcast %38 : vector<1x16xi1> to vector<16x16xi1>
    %40 = vector.broadcast %cst_12 : f32 to vector<16x16xf32>
    %41 = arith.select %39, %40, %37 : vector<16x16xi1>, vector<16x16xf32>
    %c1_i32_13 = arith.constant 1 : i32
    %42 = tpu.dynamic_rotate %26 by %c1_i32_13 dim 1 : vector<16x16xf32>, i32 -> vector<16x16xf32>
    %cst_14 = arith.constant 0.000000e+00 : f32
    %43 = vector.shape_cast %7 : vector<1x16xi1> to vector<1x16xi1>
    %44 = vector.broadcast %43 : vector<1x16xi1> to vector<16x16xi1>
    %45 = vector.broadcast %cst_14 : f32 to vector<16x16xf32>
    %46 = arith.select %44, %45, %42 : vector<16x16xi1>, vector<16x16xf32>
    %47 = arith.subf %31, %36 : vector<16x16xf32>
    %c0_15 = arith.constant 0 : index
    %c0_16 = arith.constant 0 : index
    %c0_17 = arith.constant 0 : index
    %c0_18 = arith.constant 0 : index
    %48 = vector.load %arg2[%c0_15, %c0_16, %c0_17, %c0_18] : memref<6x2x16x16xf32, #tpu.memory_space<vmem>>, vector<1x1x16x16xf32>
    %49 = vector.shape_cast %48 : vector<1x1x16x16xf32> to vector<16x16xf32>
    %50 = vector.shape_cast %47 : vector<16x16xf32> to vector<1x1x16x16xf32>
    tpu.vector_store %arg2[%c0_15, %c0_16, %c0_17, %c0_18], %50 {strides = array<i32>} : memref<6x2x16x16xf32, #tpu.memory_space<vmem>>, vector<1x1x16x16xf32>,
    %cst_19 = arith.constant 2.000000e+00 : f32
    %51 = vector.broadcast %cst_19 : f32 to vector<16x16xf32>
    %52 = arith.mulf %51, %26 : vector<16x16xf32>
    %53 = arith.addf %46, %52 : vector<16x16xf32>
    %54 = arith.addf %53, %41 : vector<16x16xf32>
    %c0_20 = arith.constant 0 : index
    %c1 = arith.constant 1 : index
    %c0_21 = arith.constant 0 : index
    %c0_22 = arith.constant 0 : index
    %55 = vector.load %arg2[%c0_20, %c1, %c0_21, %c0_22] : memref<6x2x16x16xf32, #tpu.memory_space<vmem>>, vector<1x1x16x16xf32>
    %56 = vector.shape_cast %55 : vector<1x1x16x16xf32> to vector<16x16xf32>
    %57 = vector.shape_cast %54 : vector<16x16xf32> to vector<1x1x16x16xf32>
    tpu.vector_store %arg2[%c0_20, %c1, %c0_21, %c0_22], %57 {strides = array<i32>} : memref<6x2x16x16xf32, #tpu.memory_space<vmem>>, vector<1x1x16x16xf32>,
    %c1_23 = arith.constant 1 : index
    %c0_24 = arith.constant 0 : index
    %c0_25 = arith.constant 0 : index
    %58 = vector.load %arg1[%c1_23, %c0_24, %c0_25] : memref<6x16x16xf32, #tpu.memory_space<vmem>>, vector<1x16x16xf32>
    %59 = vector.shape_cast %58 : vector<1x16x16xf32> to vector<16x16xf32>
    %c1_i32_26 = arith.constant 1 : i32
    %60 = tpu.dynamic_rotate %59 by %c1_i32_26 dim 0 : vector<16x16xf32>, i32 -> vector<16x16xf32>
    %cst_27 = arith.constant 0.000000e+00 : f32
    %61 = vector.shape_cast %3 : vector<16x1xi1> to vector<16x1xi1>
    %62 = vector.broadcast %61 : vector<16x1xi1> to vector<16x16xi1>
    %63 = vector.broadcast %cst_27 : f32 to vector<16x16xf32>
    %64 = arith.select %62, %63, %60 : vector<16x16xi1>, vector<16x16xf32>
    %c15_i32_28 = arith.constant 15 : i32
    %65 = tpu.dynamic_rotate %59 by %c15_i32_28 dim 0 : vector<16x16xf32>, i32 -> vector<16x16xf32>
    %cst_29 = arith.constant 0.000000e+00 : f32
    %66 = vector.shape_cast %5 : vector<16x1xi1> to vector<16x1xi1>
    %67 = vector.broadcast %66 : vector<16x1xi1> to vector<16x16xi1>
    %68 = vector.broadcast %cst_29 : f32 to vector<16x16xf32>
    %69 = arith.select %67, %68, %65 : vector<16x16xi1>, vector<16x16xf32>
    %cst_30 = arith.constant 2.000000e+00 : f32
    %70 = vector.broadcast %cst_30 : f32 to vector<16x16xf32>
    %71 = arith.mulf %70, %59 : vector<16x16xf32>
    %72 = arith.addf %64, %71 : vector<16x16xf32>
    %73 = arith.addf %72, %69 : vector<16x16xf32>
    %74 = arith.subf %69, %64 : vector<16x16xf32>
    %c15_i32_31 = arith.constant 15 : i32
    %75 = tpu.dynamic_rotate %73 by %c15_i32_31 dim 1 : vector<16x16xf32>, i32 -> vector<16x16xf32>
    %cst_32 = arith.constant 0.000000e+00 : f32
    %76 = vector.shape_cast %9 : vector<1x16xi1> to vector<1x16xi1>
    %77 = vector.broadcast %76 : vector<1x16xi1> to vector<16x16xi1>
    %78 = vector.broadcast %cst_32 : f32 to vector<16x16xf32>
    %79 = arith.select %77, %78, %75 : vector<16x16xi1>, vector<16x16xf32>
    %c1_i32_33 = arith.constant 1 : i32
    %80 = tpu.dynamic_rotate %73 by %c1_i32_33 dim 1 : vector<16x16xf32>, i32 -> vector<16x16xf32>
    %cst_34 = arith.constant 0.000000e+00 : f32
    %81 = vector.shape_cast %7 : vector<1x16xi1> to vector<1x16xi1>
    %82 = vector.broadcast %81 : vector<1x16xi1> to vector<16x16xi1>
    %83 = vector.broadcast %cst_34 : f32 to vector<16x16xf32>
    %84 = arith.select %82, %83, %80 : vector<16x16xi1>, vector<16x16xf32>
    %c15_i32_35 = arith.constant 15 : i32
    %85 = tpu.dynamic_rotate %74 by %c15_i32_35 dim 1 : vector<16x16xf32>, i32 -> vector<16x16xf32>
    %cst_36 = arith.constant 0.000000e+00 : f32
    %86 = vector.shape_cast %9 : vector<1x16xi1> to vector<1x16xi1>
    %87 = vector.broadcast %86 : vector<1x16xi1> to vector<16x16xi1>
    %88 = vector.broadcast %cst_36 : f32 to vector<16x16xf32>
    %89 = arith.select %87, %88, %85 : vector<16x16xi1>, vector<16x16xf32>
    %c1_i32_37 = arith.constant 1 : i32
    %90 = tpu.dynamic_rotate %74 by %c1_i32_37 dim 1 : vector<16x16xf32>, i32 -> vector<16x16xf32>
    %cst_38 = arith.constant 0.000000e+00 : f32
    %91 = vector.shape_cast %7 : vector<1x16xi1> to vector<1x16xi1>
    %92 = vector.broadcast %91 : vector<1x16xi1> to vector<16x16xi1>
    %93 = vector.broadcast %cst_38 : f32 to vector<16x16xf32>
    %94 = arith.select %92, %93, %90 : vector<16x16xi1>, vector<16x16xf32>
    %95 = arith.subf %79, %84 : vector<16x16xf32>
    %c1_39 = arith.constant 1 : index
    %c0_40 = arith.constant 0 : index
    %c0_41 = arith.constant 0 : index
    %c0_42 = arith.constant 0 : index
    %96 = vector.load %arg2[%c1_39, %c0_40, %c0_41, %c0_42] : memref<6x2x16x16xf32, #tpu.memory_space<vmem>>, vector<1x1x16x16xf32>
    %97 = vector.shape_cast %96 : vector<1x1x16x16xf32> to vector<16x16xf32>
    %98 = vector.shape_cast %95 : vector<16x16xf32> to vector<1x1x16x16xf32>
    tpu.vector_store %arg2[%c1_39, %c0_40, %c0_41, %c0_42], %98 {strides = array<i32>} : memref<6x2x16x16xf32, #tpu.memory_space<vmem>>, vector<1x1x16x16xf32>,
    %cst_43 = arith.constant 2.000000e+00 : f32
    %99 = vector.broadcast %cst_43 : f32 to vector<16x16xf32>
    %100 = arith.mulf %99, %74 : vector<16x16xf32>
    %101 = arith.addf %94, %100 : vector<16x16xf32>
    %102 = arith.addf %101, %89 : vector<16x16xf32>
    %c1_44 = arith.constant 1 : index
    %c1_45 = arith.constant 1 : index
    %c0_46 = arith.constant 0 : index
    %c0_47 = arith.constant 0 : index
    %103 = vector.load %arg2[%c1_44, %c1_45, %c0_46, %c0_47] : memref<6x2x16x16xf32, #tpu.memory_space<vmem>>, vector<1x1x16x16xf32>
    %104 = vector.shape_cast %103 : vector<1x1x16x16xf32> to vector<16x16xf32>
    %105 = vector.shape_cast %102 : vector<16x16xf32> to vector<1x1x16x16xf32>
    tpu.vector_store %arg2[%c1_44, %c1_45, %c0_46, %c0_47], %105 {strides = array<i32>} : memref<6x2x16x16xf32, #tpu.memory_space<vmem>>, vector<1x1x16x16xf32>,
    %c2 = arith.constant 2 : index
    %c0_48 = arith.constant 0 : index
    %c0_49 = arith.constant 0 : index
    %106 = vector.load %arg1[%c2, %c0_48, %c0_49] : memref<6x16x16xf32, #tpu.memory_space<vmem>>, vector<1x16x16xf32>
    %107 = vector.shape_cast %106 : vector<1x16x16xf32> to vector<16x16xf32>
    %c1_i32_50 = arith.constant 1 : i32
    %108 = tpu.dynamic_rotate %107 by %c1_i32_50 dim 0 : vector<16x16xf32>, i32 -> vector<16x16xf32>
    %cst_51 = arith.constant 0.000000e+00 : f32
    %109 = vector.shape_cast %3 : vector<16x1xi1> to vector<16x1xi1>
    %110 = vector.broadcast %109 : vector<16x1xi1> to vector<16x16xi1>
    %111 = vector.broadcast %cst_51 : f32 to vector<16x16xf32>
    %112 = arith.select %110, %111, %108 : vector<16x16xi1>, vector<16x16xf32>
    %c15_i32_52 = arith.constant 15 : i32
    %113 = tpu.dynamic_rotate %107 by %c15_i32_52 dim 0 : vector<16x16xf32>, i32 -> vector<16x16xf32>
    %cst_53 = arith.constant 0.000000e+00 : f32
    %114 = vector.shape_cast %5 : vector<16x1xi1> to vector<16x1xi1>
    %115 = vector.broadcast %114 : vector<16x1xi1> to vector<16x16xi1>
    %116 = vector.broadcast %cst_53 : f32 to vector<16x16xf32>
    %117 = arith.select %115, %116, %113 : vector<16x16xi1>, vector<16x16xf32>
    %cst_54 = arith.constant 2.000000e+00 : f32
    %118 = vector.broadcast %cst_54 : f32 to vector<16x16xf32>
    %119 = arith.mulf %118, %107 : vector<16x16xf32>
    %120 = arith.addf %112, %119 : vector<16x16xf32>
    %121 = arith.addf %120, %117 : vector<16x16xf32>
    %122 = arith.subf %117, %112 : vector<16x16xf32>
    %c15_i32_55 = arith.constant 15 : i32
    %123 = tpu.dynamic_rotate %121 by %c15_i32_55 dim 1 : vector<16x16xf32>, i32 -> vector<16x16xf32>
    %cst_56 = arith.constant 0.000000e+00 : f32
    %124 = vector.shape_cast %9 : vector<1x16xi1> to vector<1x16xi1>
    %125 = vector.broadcast %124 : vector<1x16xi1> to vector<16x16xi1>
    %126 = vector.broadcast %cst_56 : f32 to vector<16x16xf32>
    %127 = arith.select %125, %126, %123 : vector<16x16xi1>, vector<16x16xf32>
    %c1_i32_57 = arith.constant 1 : i32
    %128 = tpu.dynamic_rotate %121 by %c1_i32_57 dim 1 : vector<16x16xf32>, i32 -> vector<16x16xf32>
    %cst_58 = arith.constant 0.000000e+00 : f32
    %129 = vector.shape_cast %7 : vector<1x16xi1> to vector<1x16xi1>
    %130 = vector.broadcast %129 : vector<1x16xi1> to vector<16x16xi1>
    %131 = vector.broadcast %cst_58 : f32 to vector<16x16xf32>
    %132 = arith.select %130, %131, %128 : vector<16x16xi1>, vector<16x16xf32>
    %c15_i32_59 = arith.constant 15 : i32
    %133 = tpu.dynamic_rotate %122 by %c15_i32_59 dim 1 : vector<16x16xf32>, i32 -> vector<16x16xf32>
    %cst_60 = arith.constant 0.000000e+00 : f32
    %134 = vector.shape_cast %9 : vector<1x16xi1> to vector<1x16xi1>
    %135 = vector.broadcast %134 : vector<1x16xi1> to vector<16x16xi1>
    %136 = vector.broadcast %cst_60 : f32 to vector<16x16xf32>
    %137 = arith.select %135, %136, %133 : vector<16x16xi1>, vector<16x16xf32>
    %c1_i32_61 = arith.constant 1 : i32
    %138 = tpu.dynamic_rotate %122 by %c1_i32_61 dim 1 : vector<16x16xf32>, i32 -> vector<16x16xf32>
    %cst_62 = arith.constant 0.000000e+00 : f32
    %139 = vector.shape_cast %7 : vector<1x16xi1> to vector<1x16xi1>
    %140 = vector.broadcast %139 : vector<1x16xi1> to vector<16x16xi1>
    %141 = vector.broadcast %cst_62 : f32 to vector<16x16xf32>
    %142 = arith.select %140, %141, %138 : vector<16x16xi1>, vector<16x16xf32>
    %143 = arith.subf %127, %132 : vector<16x16xf32>
    %c2_63 = arith.constant 2 : index
    %c0_64 = arith.constant 0 : index
    %c0_65 = arith.constant 0 : index
    %c0_66 = arith.constant 0 : index
    %144 = vector.load %arg2[%c2_63, %c0_64, %c0_65, %c0_66] : memref<6x2x16x16xf32, #tpu.memory_space<vmem>>, vector<1x1x16x16xf32>
    %145 = vector.shape_cast %144 : vector<1x1x16x16xf32> to vector<16x16xf32>
    %146 = vector.shape_cast %143 : vector<16x16xf32> to vector<1x1x16x16xf32>
    tpu.vector_store %arg2[%c2_63, %c0_64, %c0_65, %c0_66], %146 {strides = array<i32>} : memref<6x2x16x16xf32, #tpu.memory_space<vmem>>, vector<1x1x16x16xf32>,
    %cst_67 = arith.constant 2.000000e+00 : f32
    %147 = vector.broadcast %cst_67 : f32 to vector<16x16xf32>
    %148 = arith.mulf %147, %122 : vector<16x16xf32>
    %149 = arith.addf %142, %148 : vector<16x16xf32>
    %150 = arith.addf %149, %137 : vector<16x16xf32>
    %c2_68 = arith.constant 2 : index
    %c1_69 = arith.constant 1 : index
    %c0_70 = arith.constant 0 : index
    %c0_71 = arith.constant 0 : index
    %151 = vector.load %arg2[%c2_68, %c1_69, %c0_70, %c0_71] : memref<6x2x16x16xf32, #tpu.memory_space<vmem>>, vector<1x1x16x16xf32>
    %152 = vector.shape_cast %151 : vector<1x1x16x16xf32> to vector<16x16xf32>
    %153 = vector.shape_cast %150 : vector<16x16xf32> to vector<1x1x16x16xf32>
    tpu.vector_store %arg2[%c2_68, %c1_69, %c0_70, %c0_71], %153 {strides = array<i32>} : memref<6x2x16x16xf32, #tpu.memory_space<vmem>>, vector<1x1x16x16xf32>,
    %c3 = arith.constant 3 : index
    %c0_72 = arith.constant 0 : index
    %c0_73 = arith.constant 0 : index
    %154 = vector.load %arg1[%c3, %c0_72, %c0_73] : memref<6x16x16xf32, #tpu.memory_space<vmem>>, vector<1x16x16xf32>
    %155 = vector.shape_cast %154 : vector<1x16x16xf32> to vector<16x16xf32>
    %c1_i32_74 = arith.constant 1 : i32
    %156 = tpu.dynamic_rotate %155 by %c1_i32_74 dim 0 : vector<16x16xf32>, i32 -> vector<16x16xf32>
    %cst_75 = arith.constant 0.000000e+00 : f32
    %157 = vector.shape_cast %3 : vector<16x1xi1> to vector<16x1xi1>
    %158 = vector.broadcast %157 : vector<16x1xi1> to vector<16x16xi1>
    %159 = vector.broadcast %cst_75 : f32 to vector<16x16xf32>
    %160 = arith.select %158, %159, %156 : vector<16x16xi1>, vector<16x16xf32>
    %c15_i32_76 = arith.constant 15 : i32
    %161 = tpu.dynamic_rotate %155 by %c15_i32_76 dim 0 : vector<16x16xf32>, i32 -> vector<16x16xf32>
    %cst_77 = arith.constant 0.000000e+00 : f32
    %162 = vector.shape_cast %5 : vector<16x1xi1> to vector<16x1xi1>
    %163 = vector.broadcast %162 : vector<16x1xi1> to vector<16x16xi1>
    %164 = vector.broadcast %cst_77 : f32 to vector<16x16xf32>
    %165 = arith.select %163, %164, %161 : vector<16x16xi1>, vector<16x16xf32>
    %cst_78 = arith.constant 2.000000e+00 : f32
    %166 = vector.broadcast %cst_78 : f32 to vector<16x16xf32>
    %167 = arith.mulf %166, %155 : vector<16x16xf32>
    %168 = arith.addf %160, %167 : vector<16x16xf32>
    %169 = arith.addf %168, %165 : vector<16x16xf32>
    %170 = arith.subf %165, %160 : vector<16x16xf32>
    %c15_i32_79 = arith.constant 15 : i32
    %171 = tpu.dynamic_rotate %169 by %c15_i32_79 dim 1 : vector<16x16xf32>, i32 -> vector<16x16xf32>
    %cst_80 = arith.constant 0.000000e+00 : f32
    %172 = vector.shape_cast %9 : vector<1x16xi1> to vector<1x16xi1>
    %173 = vector.broadcast %172 : vector<1x16xi1> to vector<16x16xi1>
    %174 = vector.broadcast %cst_80 : f32 to vector<16x16xf32>
    %175 = arith.select %173, %174, %171 : vector<16x16xi1>, vector<16x16xf32>
    %c1_i32_81 = arith.constant 1 : i32
    %176 = tpu.dynamic_rotate %169 by %c1_i32_81 dim 1 : vector<16x16xf32>, i32 -> vector<16x16xf32>
    %cst_82 = arith.constant 0.000000e+00 : f32
    %177 = vector.shape_cast %7 : vector<1x16xi1> to vector<1x16xi1>
    %178 = vector.broadcast %177 : vector<1x16xi1> to vector<16x16xi1>
    %179 = vector.broadcast %cst_82 : f32 to vector<16x16xf32>
    %180 = arith.select %178, %179, %176 : vector<16x16xi1>, vector<16x16xf32>
    %c15_i32_83 = arith.constant 15 : i32
    %181 = tpu.dynamic_rotate %170 by %c15_i32_83 dim 1 : vector<16x16xf32>, i32 -> vector<16x16xf32>
    %cst_84 = arith.constant 0.000000e+00 : f32
    %182 = vector.shape_cast %9 : vector<1x16xi1> to vector<1x16xi1>
    %183 = vector.broadcast %182 : vector<1x16xi1> to vector<16x16xi1>
    %184 = vector.broadcast %cst_84 : f32 to vector<16x16xf32>
    %185 = arith.select %183, %184, %181 : vector<16x16xi1>, vector<16x16xf32>
    %c1_i32_85 = arith.constant 1 : i32
    %186 = tpu.dynamic_rotate %170 by %c1_i32_85 dim 1 : vector<16x16xf32>, i32 -> vector<16x16xf32>
    %cst_86 = arith.constant 0.000000e+00 : f32
    %187 = vector.shape_cast %7 : vector<1x16xi1> to vector<1x16xi1>
    %188 = vector.broadcast %187 : vector<1x16xi1> to vector<16x16xi1>
    %189 = vector.broadcast %cst_86 : f32 to vector<16x16xf32>
    %190 = arith.select %188, %189, %186 : vector<16x16xi1>, vector<16x16xf32>
    %191 = arith.subf %175, %180 : vector<16x16xf32>
    %c3_87 = arith.constant 3 : index
    %c0_88 = arith.constant 0 : index
    %c0_89 = arith.constant 0 : index
    %c0_90 = arith.constant 0 : index
    %192 = vector.load %arg2[%c3_87, %c0_88, %c0_89, %c0_90] : memref<6x2x16x16xf32, #tpu.memory_space<vmem>>, vector<1x1x16x16xf32>
    %193 = vector.shape_cast %192 : vector<1x1x16x16xf32> to vector<16x16xf32>
    %194 = vector.shape_cast %191 : vector<16x16xf32> to vector<1x1x16x16xf32>
    tpu.vector_store %arg2[%c3_87, %c0_88, %c0_89, %c0_90], %194 {strides = array<i32>} : memref<6x2x16x16xf32, #tpu.memory_space<vmem>>, vector<1x1x16x16xf32>,
    %cst_91 = arith.constant 2.000000e+00 : f32
    %195 = vector.broadcast %cst_91 : f32 to vector<16x16xf32>
    %196 = arith.mulf %195, %170 : vector<16x16xf32>
    %197 = arith.addf %190, %196 : vector<16x16xf32>
    %198 = arith.addf %197, %185 : vector<16x16xf32>
    %c3_92 = arith.constant 3 : index
    %c1_93 = arith.constant 1 : index
    %c0_94 = arith.constant 0 : index
    %c0_95 = arith.constant 0 : index
    %199 = vector.load %arg2[%c3_92, %c1_93, %c0_94, %c0_95] : memref<6x2x16x16xf32, #tpu.memory_space<vmem>>, vector<1x1x16x16xf32>
    %200 = vector.shape_cast %199 : vector<1x1x16x16xf32> to vector<16x16xf32>
    %201 = vector.shape_cast %198 : vector<16x16xf32> to vector<1x1x16x16xf32>
    tpu.vector_store %arg2[%c3_92, %c1_93, %c0_94, %c0_95], %201 {strides = array<i32>} : memref<6x2x16x16xf32, #tpu.memory_space<vmem>>, vector<1x1x16x16xf32>,
    %c4 = arith.constant 4 : index
    %c0_96 = arith.constant 0 : index
    %c0_97 = arith.constant 0 : index
    %202 = vector.load %arg1[%c4, %c0_96, %c0_97] : memref<6x16x16xf32, #tpu.memory_space<vmem>>, vector<1x16x16xf32>
    %203 = vector.shape_cast %202 : vector<1x16x16xf32> to vector<16x16xf32>
    %c1_i32_98 = arith.constant 1 : i32
    %204 = tpu.dynamic_rotate %203 by %c1_i32_98 dim 0 : vector<16x16xf32>, i32 -> vector<16x16xf32>
    %cst_99 = arith.constant 0.000000e+00 : f32
    %205 = vector.shape_cast %3 : vector<16x1xi1> to vector<16x1xi1>
    %206 = vector.broadcast %205 : vector<16x1xi1> to vector<16x16xi1>
    %207 = vector.broadcast %cst_99 : f32 to vector<16x16xf32>
    %208 = arith.select %206, %207, %204 : vector<16x16xi1>, vector<16x16xf32>
    %c15_i32_100 = arith.constant 15 : i32
    %209 = tpu.dynamic_rotate %203 by %c15_i32_100 dim 0 : vector<16x16xf32>, i32 -> vector<16x16xf32>
    %cst_101 = arith.constant 0.000000e+00 : f32
    %210 = vector.shape_cast %5 : vector<16x1xi1> to vector<16x1xi1>
    %211 = vector.broadcast %210 : vector<16x1xi1> to vector<16x16xi1>
    %212 = vector.broadcast %cst_101 : f32 to vector<16x16xf32>
    %213 = arith.select %211, %212, %209 : vector<16x16xi1>, vector<16x16xf32>
    %cst_102 = arith.constant 2.000000e+00 : f32
    %214 = vector.broadcast %cst_102 : f32 to vector<16x16xf32>
    %215 = arith.mulf %214, %203 : vector<16x16xf32>
    %216 = arith.addf %208, %215 : vector<16x16xf32>
    %217 = arith.addf %216, %213 : vector<16x16xf32>
    %218 = arith.subf %213, %208 : vector<16x16xf32>
    %c15_i32_103 = arith.constant 15 : i32
    %219 = tpu.dynamic_rotate %217 by %c15_i32_103 dim 1 : vector<16x16xf32>, i32 -> vector<16x16xf32>
    %cst_104 = arith.constant 0.000000e+00 : f32
    %220 = vector.shape_cast %9 : vector<1x16xi1> to vector<1x16xi1>
    %221 = vector.broadcast %220 : vector<1x16xi1> to vector<16x16xi1>
    %222 = vector.broadcast %cst_104 : f32 to vector<16x16xf32>
    %223 = arith.select %221, %222, %219 : vector<16x16xi1>, vector<16x16xf32>
    %c1_i32_105 = arith.constant 1 : i32
    %224 = tpu.dynamic_rotate %217 by %c1_i32_105 dim 1 : vector<16x16xf32>, i32 -> vector<16x16xf32>
    %cst_106 = arith.constant 0.000000e+00 : f32
    %225 = vector.shape_cast %7 : vector<1x16xi1> to vector<1x16xi1>
    %226 = vector.broadcast %225 : vector<1x16xi1> to vector<16x16xi1>
    %227 = vector.broadcast %cst_106 : f32 to vector<16x16xf32>
    %228 = arith.select %226, %227, %224 : vector<16x16xi1>, vector<16x16xf32>
    %c15_i32_107 = arith.constant 15 : i32
    %229 = tpu.dynamic_rotate %218 by %c15_i32_107 dim 1 : vector<16x16xf32>, i32 -> vector<16x16xf32>
    %cst_108 = arith.constant 0.000000e+00 : f32
    %230 = vector.shape_cast %9 : vector<1x16xi1> to vector<1x16xi1>
    %231 = vector.broadcast %230 : vector<1x16xi1> to vector<16x16xi1>
    %232 = vector.broadcast %cst_108 : f32 to vector<16x16xf32>
    %233 = arith.select %231, %232, %229 : vector<16x16xi1>, vector<16x16xf32>
    %c1_i32_109 = arith.constant 1 : i32
    %234 = tpu.dynamic_rotate %218 by %c1_i32_109 dim 1 : vector<16x16xf32>, i32 -> vector<16x16xf32>
    %cst_110 = arith.constant 0.000000e+00 : f32
    %235 = vector.shape_cast %7 : vector<1x16xi1> to vector<1x16xi1>
    %236 = vector.broadcast %235 : vector<1x16xi1> to vector<16x16xi1>
    %237 = vector.broadcast %cst_110 : f32 to vector<16x16xf32>
    %238 = arith.select %236, %237, %234 : vector<16x16xi1>, vector<16x16xf32>
    %239 = arith.subf %223, %228 : vector<16x16xf32>
    %c4_111 = arith.constant 4 : index
    %c0_112 = arith.constant 0 : index
    %c0_113 = arith.constant 0 : index
    %c0_114 = arith.constant 0 : index
    %240 = vector.load %arg2[%c4_111, %c0_112, %c0_113, %c0_114] : memref<6x2x16x16xf32, #tpu.memory_space<vmem>>, vector<1x1x16x16xf32>
    %241 = vector.shape_cast %240 : vector<1x1x16x16xf32> to vector<16x16xf32>
    %242 = vector.shape_cast %239 : vector<16x16xf32> to vector<1x1x16x16xf32>
    tpu.vector_store %arg2[%c4_111, %c0_112, %c0_113, %c0_114], %242 {strides = array<i32>} : memref<6x2x16x16xf32, #tpu.memory_space<vmem>>, vector<1x1x16x16xf32>,
    %cst_115 = arith.constant 2.000000e+00 : f32
    %243 = vector.broadcast %cst_115 : f32 to vector<16x16xf32>
    %244 = arith.mulf %243, %218 : vector<16x16xf32>
    %245 = arith.addf %238, %244 : vector<16x16xf32>
    %246 = arith.addf %245, %233 : vector<16x16xf32>
    %c4_116 = arith.constant 4 : index
    %c1_117 = arith.constant 1 : index
    %c0_118 = arith.constant 0 : index
    %c0_119 = arith.constant 0 : index
    %247 = vector.load %arg2[%c4_116, %c1_117, %c0_118, %c0_119] : memref<6x2x16x16xf32, #tpu.memory_space<vmem>>, vector<1x1x16x16xf32>
    %248 = vector.shape_cast %247 : vector<1x1x16x16xf32> to vector<16x16xf32>
    %249 = vector.shape_cast %246 : vector<16x16xf32> to vector<1x1x16x16xf32>
    tpu.vector_store %arg2[%c4_116, %c1_117, %c0_118, %c0_119], %249 {strides = array<i32>} : memref<6x2x16x16xf32, #tpu.memory_space<vmem>>, vector<1x1x16x16xf32>,
    %c5 = arith.constant 5 : index
    %c0_120 = arith.constant 0 : index
    %c0_121 = arith.constant 0 : index
    %250 = vector.load %arg1[%c5, %c0_120, %c0_121] : memref<6x16x16xf32, #tpu.memory_space<vmem>>, vector<1x16x16xf32>
    %251 = vector.shape_cast %250 : vector<1x16x16xf32> to vector<16x16xf32>
    %c1_i32_122 = arith.constant 1 : i32
    %252 = tpu.dynamic_rotate %251 by %c1_i32_122 dim 0 : vector<16x16xf32>, i32 -> vector<16x16xf32>
    %cst_123 = arith.constant 0.000000e+00 : f32
    %253 = vector.shape_cast %3 : vector<16x1xi1> to vector<16x1xi1>
    %254 = vector.broadcast %253 : vector<16x1xi1> to vector<16x16xi1>
    %255 = vector.broadcast %cst_123 : f32 to vector<16x16xf32>
    %256 = arith.select %254, %255, %252 : vector<16x16xi1>, vector<16x16xf32>
    %c15_i32_124 = arith.constant 15 : i32
    %257 = tpu.dynamic_rotate %251 by %c15_i32_124 dim 0 : vector<16x16xf32>, i32 -> vector<16x16xf32>
    %cst_125 = arith.constant 0.000000e+00 : f32
    %258 = vector.shape_cast %5 : vector<16x1xi1> to vector<16x1xi1>
    %259 = vector.broadcast %258 : vector<16x1xi1> to vector<16x16xi1>
    %260 = vector.broadcast %cst_125 : f32 to vector<16x16xf32>
    %261 = arith.select %259, %260, %257 : vector<16x16xi1>, vector<16x16xf32>
    %cst_126 = arith.constant 2.000000e+00 : f32
    %262 = vector.broadcast %cst_126 : f32 to vector<16x16xf32>
    %263 = arith.mulf %262, %251 : vector<16x16xf32>
    %264 = arith.addf %256, %263 : vector<16x16xf32>
    %265 = arith.addf %264, %261 : vector<16x16xf32>
    %266 = arith.subf %261, %256 : vector<16x16xf32>
    %c15_i32_127 = arith.constant 15 : i32
    %267 = tpu.dynamic_rotate %265 by %c15_i32_127 dim 1 : vector<16x16xf32>, i32 -> vector<16x16xf32>
    %cst_128 = arith.constant 0.000000e+00 : f32
    %268 = vector.shape_cast %9 : vector<1x16xi1> to vector<1x16xi1>
    %269 = vector.broadcast %268 : vector<1x16xi1> to vector<16x16xi1>
    %270 = vector.broadcast %cst_128 : f32 to vector<16x16xf32>
    %271 = arith.select %269, %270, %267 : vector<16x16xi1>, vector<16x16xf32>
    %c1_i32_129 = arith.constant 1 : i32
    %272 = tpu.dynamic_rotate %265 by %c1_i32_129 dim 1 : vector<16x16xf32>, i32 -> vector<16x16xf32>
    %cst_130 = arith.constant 0.000000e+00 : f32
    %273 = vector.shape_cast %7 : vector<1x16xi1> to vector<1x16xi1>
    %274 = vector.broadcast %273 : vector<1x16xi1> to vector<16x16xi1>
    %275 = vector.broadcast %cst_130 : f32 to vector<16x16xf32>
    %276 = arith.select %274, %275, %272 : vector<16x16xi1>, vector<16x16xf32>
    %c15_i32_131 = arith.constant 15 : i32
    %277 = tpu.dynamic_rotate %266 by %c15_i32_131 dim 1 : vector<16x16xf32>, i32 -> vector<16x16xf32>
    %cst_132 = arith.constant 0.000000e+00 : f32
    %278 = vector.shape_cast %9 : vector<1x16xi1> to vector<1x16xi1>
    %279 = vector.broadcast %278 : vector<1x16xi1> to vector<16x16xi1>
    %280 = vector.broadcast %cst_132 : f32 to vector<16x16xf32>
    %281 = arith.select %279, %280, %277 : vector<16x16xi1>, vector<16x16xf32>
    %c1_i32_133 = arith.constant 1 : i32
    %282 = tpu.dynamic_rotate %266 by %c1_i32_133 dim 1 : vector<16x16xf32>, i32 -> vector<16x16xf32>
    %cst_134 = arith.constant 0.000000e+00 : f32
    %283 = vector.shape_cast %7 : vector<1x16xi1> to vector<1x16xi1>
    %284 = vector.broadcast %283 : vector<1x16xi1> to vector<16x16xi1>
    %285 = vector.broadcast %cst_134 : f32 to vector<16x16xf32>
    %286 = arith.select %284, %285, %282 : vector<16x16xi1>, vector<16x16xf32>
    %287 = arith.subf %271, %276 : vector<16x16xf32>
    %c5_135 = arith.constant 5 : index
    %c0_136 = arith.constant 0 : index
    %c0_137 = arith.constant 0 : index
    %c0_138 = arith.constant 0 : index
    %288 = vector.load %arg2[%c5_135, %c0_136, %c0_137, %c0_138] : memref<6x2x16x16xf32, #tpu.memory_space<vmem>>, vector<1x1x16x16xf32>
    %289 = vector.shape_cast %288 : vector<1x1x16x16xf32> to vector<16x16xf32>
    %290 = vector.shape_cast %287 : vector<16x16xf32> to vector<1x1x16x16xf32>
    tpu.vector_store %arg2[%c5_135, %c0_136, %c0_137, %c0_138], %290 {strides = array<i32>} : memref<6x2x16x16xf32, #tpu.memory_space<vmem>>, vector<1x1x16x16xf32>,
    %cst_139 = arith.constant 2.000000e+00 : f32
    %291 = vector.broadcast %cst_139 : f32 to vector<16x16xf32>
    %292 = arith.mulf %291, %266 : vector<16x16xf32>
    %293 = arith.addf %286, %292 : vector<16x16xf32>
    %294 = arith.addf %293, %281 : vector<16x16xf32>
    %c5_140 = arith.constant 5 : index
    %c1_141 = arith.constant 1 : index
    %c0_142 = arith.constant 0 : index
    %c0_143 = arith.constant 0 : index
    %295 = vector.load %arg2[%c5_140, %c1_141, %c0_142, %c0_143] : memref<6x2x16x16xf32, #tpu.memory_space<vmem>>, vector<1x1x16x16xf32>
    %296 = vector.shape_cast %295 : vector<1x1x16x16xf32> to vector<16x16xf32>
    %297 = vector.shape_cast %294 : vector<16x16xf32> to vector<1x1x16x16xf32>
    tpu.vector_store %arg2[%c5_140, %c1_141, %c0_142, %c0_143], %297 {strides = array<i32>} : memref<6x2x16x16xf32, #tpu.memory_space<vmem>>, vector<1x1x16x16xf32>,
    return
  }
  func.func @transform_0(%arg0: i32) -> (i32, i32, i32) {
    %c0_i32 = arith.constant 0 : i32
    %c0_i32_0 = arith.constant 0 : i32
    %c0_i32_1 = arith.constant 0 : i32
    return %arg0, %c0_i32, %c0_i32_0 : i32, i32, i32
  }
  func.func @transform_1(%arg0: i32) -> (i32, i32, i32, i32) {
    %c0_i32 = arith.constant 0 : i32
    %c0_i32_0 = arith.constant 0 : i32
    %c0_i32_1 = arith.constant 0 : i32
    %c0_i32_2 = arith.constant 0 : i32
    return %arg0, %c0_i32, %c0_i32_0, %c0_i32_1 : i32, i32, i32, i32
  }
}

</mosaic_0001>

<llo_original>
// kernel: sobel.1
$region0: #{sobel.1}
  #allocation0 [shape = 'u32[]', space=smem, size = 0x4, offset = 0x4, fixed_abs, tag = 'smem constant byte address 0x4 - core index']
  #allocation1 [shape = 'u32[144,128]{1,0:T(1,128)}', space=vmem, size = 0x12000, scoped, tag = 'internal scratch']
  %s0 = inlined_call_operand.hbm [shape: f32[6,16,16], index: 0, kind: input, shape index: {}]
  %s1 = inlined_call_operand.hbm [shape: f32[6,2,16,16], index: 1, kind: output, shape index: {}]
  %s2 = sld [smem:[#allocation0]]
  $region18: #{sobel.1} parent=0
    _
  %s4 = ssub.s32 1, %s2
  %s5 = scalar_select 0, %s4, %s2
  $region1: #{sobel.1} parent=0
    #allocation2 [shape = 'u8[49152]{0}', space=vmem, size = 0xc000, scoped, tag = 'input window, operand 0, single buffered']
    #allocation3 [shape = 's32[1]{0}', space=sflag, size = 0x4, scoped, tag = 'scoped memory for sobel.1']
    #allocation4 [shape = 's32[1]{0}', space=sflag, size = 0x4, scoped, tag = 'scoped memory for sobel.1']
    #allocation5 [shape = 'u8[98304]{0}', space=vmem, size = 0x18000, scoped, tag = 'output window, operand 0, single buffered']
    %6 = vsyncpa [#allocation3], 0
    %7 = vsyncpa [#allocation4], 0
    // Predicated region
    $region2: #{sobel.1} parent=1 // pred_check
      _
    $region3: #{sobel.1} parent=1 // pred_check_branch
      %9 = sbr.rel (0) target = $region5
    $region4: #{sobel.1} parent=1 // pred_region
      %s11 = ssub.s32 1536, 1536
      %12 = vsyncadd [#allocation3], %s11
      %s13 = sshll.u32 [#allocation2], 4
      %s14 = int_to_ptr.vmem [resolvable:$true] %s13
      %19 = dma.hbm_to_vmem [thread:$0]  %s0, 1536, %s14, [#allocation3], 128, 128, 8
    $region5: #{sobel.1} parent=1 // pred_fallthru
      _
    // Predicated region
    $region6: #{sobel.1} parent=1 // pred_check
      _
    $region7: #{sobel.1} parent=1 // pred_check_branch
      %21 = sbr.rel (0) target = $region9
    $region8: #{sobel.1} parent=1 // pred_region
      %22 = dma.done [#allocation3], 1536
    $region9: #{sobel.1} parent=1 // pred_fallthru
      _
    %v23 = vlaneseq
    %v24 = vshrl.u32 %v23, 7
    %v25 = vadd.s32 %v24, 8
    %v26 = vlaneseq
    %v27 = vand.u32 %v26, 127
    %vm28 = vcmp.eq.s32.totalorder %v24, 0
    %vm29 = vcmp.eq.s32.totalorder %v25, 0
    %vm30 = vcmp.eq.s32.totalorder %v24, 15
    %vm31 = vcmp.eq.s32.totalorder %v25, 15
    %vm32 = vcmp.eq.s32.totalorder %v27, 0
    %vm33 = vcmp.eq.s32.totalorder %v27, 15
    %v34 = vld [vmem:[#allocation2] sm:$0xff]
    %v35 = vld [vmem:[#allocation2 + $0x8] sm:$0xff]
    %v36 = vrot.slane %v34, 7
    %v37 = vrot.slane %v35, 7
    %vm38 = vcmp.lt.s32.totalorder %v24, 1
    %v39 = vsel %vm38, %v36, %v37
    %v40 = vsel %vm38, %v37, %v36
    %v41 = vsel %vm28, 1, 0
    %v42 = vsel %vm29, 1, 0
    %vm43 = vcmp.eq.s32.totalorder %v41, 1
    %vm44 = vcmp.eq.s32.totalorder %v42, 1
    %v45 = vsel %vm43, 0.0, %v40
    %v46 = vsel %vm44, 0.0, %v39
    %v47 = vrot.slane %v34, 1
    %v48 = vrot.slane %v35, 1
    %vm49 = vcmp.lt.s32.totalorder %v24, 7
    %v50 = vsel %vm49, %v47, %v48
    %v51 = vsel %vm49, %v48, %v47
    %v52 = vsel %vm30, 1, 0
    %v53 = vsel %vm31, 1, 0
    %vm54 = vcmp.eq.s32.totalorder %v52, 1
    %vm55 = vcmp.eq.s32.totalorder %v53, 1
    %v56 = vsel %vm54, 0.0, %v50
    %v57 = vsel %vm55, 0.0, %v51
    %v58 = vmul.f32 %v34, 2.0
    %v59 = vmul.f32 %v35, 2.0
    %v60 = vadd.f32 %v45, %v58
    %v61 = vadd.f32 %v46, %v59
    %v62 = vadd.f32 %v60, %v56
    %v63 = vadd.f32 %v61, %v57
    %v64 = vsub.f32 %v56, %v45
    %v65 = vsub.f32 %v57, %v46
    %vm66 = vcmask 1047680
    %67 = vrot.lane.b32.xlu0 %v62, 16
    %v68 = vpop.permute.xlu0 %67
    %v69 = vsel %vm66, %v68, %v62
    %70 = vrot.lane.b32.xlu0 %v63, 16
    %v71 = vpop.permute.xlu0 %70
    %v72 = vsel %vm66, %v71, %v63
    %73 = vrot.lane.b32.xlu0 %v69, 16
    %v74 = vpop.permute.xlu0 %73
    %75 = vrot.lane.b32.xlu0 %v72, 16
    %v76 = vpop.permute.xlu0 %75
    %v77 = vsel %vm66, %v74, %v62
    %v78 = vsel %vm66, %v76, %v63
    %v79 = vsel %vm33, 1, 0
    %vm80 = vcmp.eq.s32.totalorder %v79, 1
    %83 = vrot.lane.b32.xlu0 %v77, 127
    %v84 = vpop.permute.xlu0 %83
    %85 = vrot.lane.b32.xlu0 %v78, 127
    %v86 = vpop.permute.xlu0 %85
    %v89 = vsel %vm80, 0.0, %v84
    %v90 = vsel %vm80, 0.0, %v86
    %v91 = vsel %vm32, 1, 0
    %vm92 = vcmp.eq.s32.totalorder %v91, 1
    %93 = vrot.lane.b32.xlu0 %v77, 113
    %v94 = vpop.permute.xlu0 %93
    %95 = vrot.lane.b32.xlu0 %v78, 113
    %v96 = vpop.permute.xlu0 %95
    %v99 = vsel %vm92, 0.0, %v94
    %v100 = vsel %vm92, 0.0, %v96
    %101 = vrot.lane.b32.xlu0 %v64, 16
    %v102 = vpop.permute.xlu0 %101
    %v103 = vsel %vm66, %v102, %v64
    %104 = vrot.lane.b32.xlu0 %v65, 16
    %v105 = vpop.permute.xlu0 %104
    %v106 = vsel %vm66, %v105, %v65
    %107 = vrot.lane.b32.xlu0 %v103, 16
    %v108 = vpop.permute.xlu0 %107
    %109 = vrot.lane.b32.xlu0 %v106, 16
    %v110 = vpop.permute.xlu0 %109
    %v111 = vsel %vm66, %v108, %v64
    %v112 = vsel %vm66, %v110, %v65
    %115 = vrot.lane.b32.xlu0 %v111, 127
    %v116 = vpop.permute.xlu0 %115
    %117 = vrot.lane.b32.xlu0 %v112, 127
    %v118 = vpop.permute.xlu0 %117
    %v121 = vsel %vm80, 0.0, %v116
    %v122 = vsel %vm80, 0.0, %v118
    %123 = vrot.lane.b32.xlu0 %v111, 113
    %v124 = vpop.permute.xlu0 %123
    %125 = vrot.lane.b32.xlu0 %v112, 113
    %v126 = vpop.permute.xlu0 %125
    %v129 = vsel %vm92, 0.0, %v124
    %v130 = vsel %vm92, 0.0, %v126
    %v131 = vsub.f32 %v89, %v99
    %v132 = vsub.f32 %v90, %v100
    %vm133 = vcmask 130048
    %134 = vst.msk [vmem:[#allocation5] sm:$0xff] %vm133, %v131
    %135 = vst.msk [vmem:[#allocation5 + $0x8] sm:$0xff] %vm133, %v132
    %v136 = vmul.f32 %v64, 2.0
    %v137 = vmul.f32 %v65, 2.0
    %v138 = vadd.f32 %v129, %v136
    %v139 = vadd.f32 %v130, %v137
    %v140 = vadd.f32 %v138, %v121
    %v141 = vadd.f32 %v139, %v122
    %s142 = scalar_lea.vmem [#allocation5], 16
    %143 = vst.msk [vmem:[%s142] sm:$0xff] %vm133, %v140
    %144 = vst.msk [vmem:[%s142 + $0x8] sm:$0xff] %vm133, %v141
    %s145 = scalar_lea.vmem [#allocation2], 16
    %v146 = vld [vmem:[%s145] sm:$0xff]
    %v147 = vld [vmem:[%s145 + $0x8] sm:$0xff]
    %v148 = vrot.slane %v146, 7
    %v149 = vrot.slane %v147, 7
    %v150 = vsel %vm38, %v148, %v149
    %v151 = vsel %vm38, %v149, %v148
    %v152 = vsel %vm43, 0.0, %v151
    %v153 = vsel %vm44, 0.0, %v150
    %v154 = vrot.slane %v146, 1
    %v155 = vrot.slane %v147, 1
    %v156 = vsel %vm49, %v154, %v155
    %v157 = vsel %vm49, %v155, %v154
    %v158 = vsel %vm54, 0.0, %v156
    %v159 = vsel %vm55, 0.0, %v157
    %v160 = vmul.f32 %v146, 2.0
    %v161 = vmul.f32 %v147, 2.0
    %v162 = vadd.f32 %v152, %v160
    %v163 = vadd.f32 %v153, %v161
    %v164 = vadd.f32 %v162, %v158
    %v165 = vadd.f32 %v163, %v159
    %v166 = vsub.f32 %v158, %v152
    %v167 = vsub.f32 %v159, %v153
    %168 = vrot.lane.b32.xlu0 %v164, 16
    %v169 = vpop.permute.xlu0 %168
    %v170 = vsel %vm66, %v169, %v164
    %171 = vrot.lane.b32.xlu0 %v165, 16
    %v172 = vpop.permute.xlu0 %171
    %v173 = vsel %vm66, %v172, %v165
    %174 = vrot.lane.b32.xlu0 %v170, 16
    %v175 = vpop.permute.xlu0 %174
    %176 = vrot.lane.b32.xlu0 %v173, 16
    %v177 = vpop.permute.xlu0 %176
    %v178 = vsel %vm66, %v175, %v164
    %v179 = vsel %vm66, %v177, %v165
    %182 = vrot.lane.b32.xlu0 %v178, 127
    %v183 = vpop.permute.xlu0 %182
    %184 = vrot.lane.b32.xlu0 %v179, 127
    %v185 = vpop.permute.xlu0 %184
    %v188 = vsel %vm80, 0.0, %v183
    %v189 = vsel %vm80, 0.0, %v185
    %190 = vrot.lane.b32.xlu0 %v178, 113
    %v191 = vpop.permute.xlu0 %190
    %192 = vrot.lane.b32.xlu0 %v179, 113
    %v193 = vpop.permute.xlu0 %192
    %v196 = vsel %vm92, 0.0, %v191
    %v197 = vsel %vm92, 0.0, %v193
    %198 = vrot.lane.b32.xlu0 %v166, 16
    %v199 = vpop.permute.xlu0 %198
    %v200 = vsel %vm66, %v199, %v166
    %201 = vrot.lane.b32.xlu0 %v167, 16
    %v202 = vpop.permute.xlu0 %201
    %v203 = vsel %vm66, %v202, %v167
    %204 = vrot.lane.b32.xlu0 %v200, 16
    %v205 = vpop.permute.xlu0 %204
    %206 = vrot.lane.b32.xlu0 %v203, 16
    %v207 = vpop.permute.xlu0 %206
    %v208 = vsel %vm66, %v205, %v166
    %v209 = vsel %vm66, %v207, %v167
    %212 = vrot.lane.b32.xlu0 %v208, 127
    %v213 = vpop.permute.xlu0 %212
    %214 = vrot.lane.b32.xlu0 %v209, 127
    %v215 = vpop.permute.xlu0 %214
    %v218 = vsel %vm80, 0.0, %v213
    %v219 = vsel %vm80, 0.0, %v215
    %220 = vrot.lane.b32.xlu0 %v208, 113
    %v221 = vpop.permute.xlu0 %220
    %222 = vrot.lane.b32.xlu0 %v209, 113
    %v223 = vpop.permute.xlu0 %222
    %v226 = vsel %vm92, 0.0, %v221
    %v227 = vsel %vm92, 0.0, %v223
    %v228 = vsub.f32 %v188, %v196
    %v229 = vsub.f32 %v189, %v197
    %s230 = scalar_lea.vmem [#allocation5], 32
    %231 = vst.msk [vmem:[%s230] sm:$0xff] %vm133, %v228
    %232 = vst.msk [vmem:[%s230 + $0x8] sm:$0xff] %vm133, %v229
    %v233 = vmul.f32 %v166, 2.0
    %v234 = vmul.f32 %v167, 2.0
    %v235 = vadd.f32 %v226, %v233
    %v236 = vadd.f32 %v227, %v234
    %v237 = vadd.f32 %v235, %v218
    %v238 = vadd.f32 %v236, %v219
    %s239 = scalar_lea.vmem [#allocation5], 48
    %240 = vst.msk [vmem:[%s239] sm:$0xff] %vm133, %v237
    %241 = vst.msk [vmem:[%s239 + $0x8] sm:$0xff] %vm133, %v238
    %s242 = scalar_lea.vmem [#allocation2], 32
    %v243 = vld [vmem:[%s242] sm:$0xff]
    %v244 = vld [vmem:[%s242 + $0x8] sm:$0xff]
    %v245 = vrot.slane %v243, 7
    %v246 = vrot.slane %v244, 7
    %v247 = vsel %vm38, %v245, %v246
    %v248 = vsel %vm38, %v246, %v245
    %v249 = vsel %vm43, 0.0, %v248
    %v250 = vsel %vm44, 0.0, %v247
    %v251 = vrot.slane %v243, 1
    %v252 = vrot.slane %v244, 1
    %v253 = vsel %vm49, %v251, %v252
    %v254 = vsel %vm49, %v252, %v251
    %v255 = vsel %vm54, 0.0, %v253
    %v256 = vsel %vm55, 0.0, %v254
    %v257 = vmul.f32 %v243, 2.0
    %v258 = vmul.f32 %v244, 2.0
    %v259 = vadd.f32 %v249, %v257
    %v260 = vadd.f32 %v250, %v258
    %v261 = vadd.f32 %v259, %v255
    %v262 = vadd.f32 %v260, %v256
    %v263 = vsub.f32 %v255, %v249
    %v264 = vsub.f32 %v256, %v250
    %265 = vrot.lane.b32.xlu0 %v261, 16
    %v266 = vpop.permute.xlu0 %265
    %v267 = vsel %vm66, %v266, %v261
    %268 = vrot.lane.b32.xlu0 %v262, 16
    %v269 = vpop.permute.xlu0 %268
    %v270 = vsel %vm66, %v269, %v262
    %271 = vrot.lane.b32.xlu0 %v267, 16
    %v272 = vpop.permute.xlu0 %271
    %273 = vrot.lane.b32.xlu0 %v270, 16
    %v274 = vpop.permute.xlu0 %273
    %v275 = vsel %vm66, %v272, %v261
    %v276 = vsel %vm66, %v274, %v262
    %279 = vrot.lane.b32.xlu0 %v275, 127
    %v280 = vpop.permute.xlu0 %279
    %281 = vrot.lane.b32.xlu0 %v276, 127
    %v282 = vpop.permute.xlu0 %281
    %v285 = vsel %vm80, 0.0, %v280
    %v286 = vsel %vm80, 0.0, %v282
    %287 = vrot.lane.b32.xlu0 %v275, 113
    %v288 = vpop.permute.xlu0 %287
    %289 = vrot.lane.b32.xlu0 %v276, 113
    %v290 = vpop.permute.xlu0 %289
    %v293 = vsel %vm92, 0.0, %v288
    %v294 = vsel %vm92, 0.0, %v290
    %295 = vrot.lane.b32.xlu0 %v263, 16
    %v296 = vpop.permute.xlu0 %295
    %v297 = vsel %vm66, %v296, %v263
    %298 = vrot.lane.b32.xlu0 %v264, 16
    %v299 = vpop.permute.xlu0 %298
    %v300 = vsel %vm66, %v299, %v264
    %301 = vrot.lane.b32.xlu0 %v297, 16
    %v302 = vpop.permute.xlu0 %301
    %303 = vrot.lane.b32.xlu0 %v300, 16
    %v304 = vpop.permute.xlu0 %303
    %v305 = vsel %vm66, %v302, %v263
    %v306 = vsel %vm66, %v304, %v264
    %309 = vrot.lane.b32.xlu0 %v305, 127
    %v310 = vpop.permute.xlu0 %309
    %311 = vrot.lane.b32.xlu0 %v306, 127
    %v312 = vpop.permute.xlu0 %311
    %v315 = vsel %vm80, 0.0, %v310
    %v316 = vsel %vm80, 0.0, %v312
    %317 = vrot.lane.b32.xlu0 %v305, 113
    %v318 = vpop.permute.xlu0 %317
    %319 = vrot.lane.b32.xlu0 %v306, 113
    %v320 = vpop.permute.xlu0 %319
    %v323 = vsel %vm92, 0.0, %v318
    %v324 = vsel %vm92, 0.0, %v320
    %v325 = vsub.f32 %v285, %v293
    %v326 = vsub.f32 %v286, %v294
    %s327 = scalar_lea.vmem [#allocation5], 64
    %328 = vst.msk [vmem:[%s327] sm:$0xff] %vm133, %v325
    %329 = vst.msk [vmem:[%s327 + $0x8] sm:$0xff] %vm133, %v326
    %v330 = vmul.f32 %v263, 2.0
    %v331 = vmul.f32 %v264, 2.0
    %v332 = vadd.f32 %v323, %v330
    %v333 = vadd.f32 %v324, %v331
    %v334 = vadd.f32 %v332, %v315
    %v335 = vadd.f32 %v333, %v316
    %s336 = scalar_lea.vmem [#allocation5], 80
    %337 = vst.msk [vmem:[%s336] sm:$0xff] %vm133, %v334
    %338 = vst.msk [vmem:[%s336 + $0x8] sm:$0xff] %vm133, %v335
    %s339 = scalar_lea.vmem [#allocation2], 48
    %v340 = vld [vmem:[%s339] sm:$0xff]
    %v341 = vld [vmem:[%s339 + $0x8] sm:$0xff]
    %v342 = vrot.slane %v340, 7
    %v343 = vrot.slane %v341, 7
    %v344 = vsel %vm38, %v342, %v343
    %v345 = vsel %vm38, %v343, %v342
    %v346 = vsel %vm43, 0.0, %v345
    %v347 = vsel %vm44, 0.0, %v344
    %v348 = vrot.slane %v340, 1
    %v349 = vrot.slane %v341, 1
    %v350 = vsel %vm49, %v348, %v349
    %v351 = vsel %vm49, %v349, %v348
    %v352 = vsel %vm54, 0.0, %v350
    %v353 = vsel %vm55, 0.0, %v351
    %v354 = vmul.f32 %v340, 2.0
    %v355 = vmul.f32 %v341, 2.0
    %v356 = vadd.f32 %v346, %v354
    %v357 = vadd.f32 %v347, %v355
    %v358 = vadd.f32 %v356, %v352
    %v359 = vadd.f32 %v357, %v353
    %v360 = vsub.f32 %v352, %v346
    %v361 = vsub.f32 %v353, %v347
    %362 = vrot.lane.b32.xlu0 %v358, 16
    %v363 = vpop.permute.xlu0 %362
    %v364 = vsel %vm66, %v363, %v358
    %365 = vrot.lane.b32.xlu0 %v359, 16
    %v366 = vpop.permute.xlu0 %365
    %v367 = vsel %vm66, %v366, %v359
    %368 = vrot.lane.b32.xlu0 %v364, 16
    %v369 = vpop.permute.xlu0 %368
    %370 = vrot.lane.b32.xlu0 %v367, 16
    %v371 = vpop.permute.xlu0 %370
    %v372 = vsel %vm66, %v369, %v358
    %v373 = vsel %vm66, %v371, %v359
    %376 = vrot.lane.b32.xlu0 %v372, 127
    %v377 = vpop.permute.xlu0 %376
    %378 = vrot.lane.b32.xlu0 %v373, 127
    %v379 = vpop.permute.xlu0 %378
    %v382 = vsel %vm80, 0.0, %v377
    %v383 = vsel %vm80, 0.0, %v379
    %384 = vrot.lane.b32.xlu0 %v372, 113
    %v385 = vpop.permute.xlu0 %384
    %386 = vrot.lane.b32.xlu0 %v373, 113
    %v387 = vpop.permute.xlu0 %386
    %v390 = vsel %vm92, 0.0, %v385
    %v391 = vsel %vm92, 0.0, %v387
    %392 = vrot.lane.b32.xlu0 %v360, 16
    %v393 = vpop.permute.xlu0 %392
    %v394 = vsel %vm66, %v393, %v360
    %395 = vrot.lane.b32.xlu0 %v361, 16
    %v396 = vpop.permute.xlu0 %395
    %v397 = vsel %vm66, %v396, %v361
    %398 = vrot.lane.b32.xlu0 %v394, 16
    %v399 = vpop.permute.xlu0 %398
    %400 = vrot.lane.b32.xlu0 %v397, 16
    %v401 = vpop.permute.xlu0 %400
    %v402 = vsel %vm66, %v399, %v360
    %v403 = vsel %vm66, %v401, %v361
    %406 = vrot.lane.b32.xlu0 %v402, 127
    %v407 = vpop.permute.xlu0 %406
    %408 = vrot.lane.b32.xlu0 %v403, 127
    %v409 = vpop.permute.xlu0 %408
    %v412 = vsel %vm80, 0.0, %v407
    %v413 = vsel %vm80, 0.0, %v409
    %414 = vrot.lane.b32.xlu0 %v402, 113
    %v415 = vpop.permute.xlu0 %414
    %416 = vrot.lane.b32.xlu0 %v403, 113
    %v417 = vpop.permute.xlu0 %416
    %v420 = vsel %vm92, 0.0, %v415
    %v421 = vsel %vm92, 0.0, %v417
    %v422 = vsub.f32 %v382, %v390
    %v423 = vsub.f32 %v383, %v391
    %s424 = scalar_lea.vmem [#allocation5], 96
    %425 = vst.msk [vmem:[%s424] sm:$0xff] %vm133, %v422
    %426 = vst.msk [vmem:[%s424 + $0x8] sm:$0xff] %vm133, %v423
    %v427 = vmul.f32 %v360, 2.0
    %v428 = vmul.f32 %v361, 2.0
    %v429 = vadd.f32 %v420, %v427
    %v430 = vadd.f32 %v421, %v428
    %v431 = vadd.f32 %v429, %v412
    %v432 = vadd.f32 %v430, %v413
    %s433 = scalar_lea.vmem [#allocation5], 112
    %434 = vst.msk [vmem:[%s433] sm:$0xff] %vm133, %v431
    %435 = vst.msk [vmem:[%s433 + $0x8] sm:$0xff] %vm133, %v432
    %s436 = scalar_lea.vmem [#allocation2], 64
    %v437 = vld [vmem:[%s436] sm:$0xff]
    %v438 = vld [vmem:[%s436 + $0x8] sm:$0xff]
    %v439 = vrot.slane %v437, 7
    %v440 = vrot.slane %v438, 7
    %v441 = vsel %vm38, %v439, %v440
    %v442 = vsel %vm38, %v440, %v439
    %v443 = vsel %vm43, 0.0, %v442
    %v444 = vsel %vm44, 0.0, %v441
    %v445 = vrot.slane %v437, 1
    %v446 = vrot.slane %v438, 1
    %v447 = vsel %vm49, %v445, %v446
    %v448 = vsel %vm49, %v446, %v445
    %v449 = vsel %vm54, 0.0, %v447
    %v450 = vsel %vm55, 0.0, %v448
    %v451 = vmul.f32 %v437, 2.0
    %v452 = vmul.f32 %v438, 2.0
    %v453 = vadd.f32 %v443, %v451
    %v454 = vadd.f32 %v444, %v452
    %v455 = vadd.f32 %v453, %v449
    %v456 = vadd.f32 %v454, %v450
    %v457 = vsub.f32 %v449, %v443
    %v458 = vsub.f32 %v450, %v444
    %459 = vrot.lane.b32.xlu0 %v455, 16
    %v460 = vpop.permute.xlu0 %459
    %v461 = vsel %vm66, %v460, %v455
    %462 = vrot.lane.b32.xlu0 %v456, 16
    %v463 = vpop.permute.xlu0 %462
    %v464 = vsel %vm66, %v463, %v456
    %465 = vrot.lane.b32.xlu0 %v461, 16
    %v466 = vpop.permute.xlu0 %465
    %467 = vrot.lane.b32.xlu0 %v464, 16
    %v468 = vpop.permute.xlu0 %467
    %v469 = vsel %vm66, %v466, %v455
    %v470 = vsel %vm66, %v468, %v456
    %473 = vrot.lane.b32.xlu0 %v469, 127
    %v474 = vpop.permute.xlu0 %473
    %475 = vrot.lane.b32.xlu0 %v470, 127
    %v476 = vpop.permute.xlu0 %475
    %v479 = vsel %vm80, 0.0, %v474
    %v480 = vsel %vm80, 0.0, %v476
    %481 = vrot.lane.b32.xlu0 %v469, 113
    %v482 = vpop.permute.xlu0 %481
    %483 = vrot.lane.b32.xlu0 %v470, 113
    %v484 = vpop.permute.xlu0 %483
    %v487 = vsel %vm92, 0.0, %v482
    %v488 = vsel %vm92, 0.0, %v484
    %489 = vrot.lane.b32.xlu0 %v457, 16
    %v490 = vpop.permute.xlu0 %489
    %v491 = vsel %vm66, %v490, %v457
    %492 = vrot.lane.b32.xlu0 %v458, 16
    %v493 = vpop.permute.xlu0 %492
    %v494 = vsel %vm66, %v493, %v458
    %495 = vrot.lane.b32.xlu0 %v491, 16
    %v496 = vpop.permute.xlu0 %495
    %497 = vrot.lane.b32.xlu0 %v494, 16
    %v498 = vpop.permute.xlu0 %497
    %v499 = vsel %vm66, %v496, %v457
    %v500 = vsel %vm66, %v498, %v458
    %503 = vrot.lane.b32.xlu0 %v499, 127
    %v504 = vpop.permute.xlu0 %503
    %505 = vrot.lane.b32.xlu0 %v500, 127
    %v506 = vpop.permute.xlu0 %505
    %v509 = vsel %vm80, 0.0, %v504
    %v510 = vsel %vm80, 0.0, %v506
    %511 = vrot.lane.b32.xlu0 %v499, 113
    %v512 = vpop.permute.xlu0 %511
    %513 = vrot.lane.b32.xlu0 %v500, 113
    %v514 = vpop.permute.xlu0 %513
    %v517 = vsel %vm92, 0.0, %v512
    %v518 = vsel %vm92, 0.0, %v514
    %v519 = vsub.f32 %v479, %v487
    %v520 = vsub.f32 %v480, %v488
    %s521 = scalar_lea.vmem [#allocation5], 128
    %522 = vst.msk [vmem:[%s521] sm:$0xff] %vm133, %v519
    %523 = vst.msk [vmem:[%s521 + $0x8] sm:$0xff] %vm133, %v520
    %v524 = vmul.f32 %v457, 2.0
    %v525 = vmul.f32 %v458, 2.0
    %v526 = vadd.f32 %v517, %v524
    %v527 = vadd.f32 %v518, %v525
    %v528 = vadd.f32 %v526, %v509
    %v529 = vadd.f32 %v527, %v510
    %s530 = scalar_lea.vmem [#allocation5], 144
    %531 = vst.msk [vmem:[%s530] sm:$0xff] %vm133, %v528
    %532 = vst.msk [vmem:[%s530 + $0x8] sm:$0xff] %vm133, %v529
    %s533 = scalar_lea.vmem [#allocation2], 80
    %v534 = vld [vmem:[%s533] sm:$0xff]
    %v535 = vld [vmem:[%s533 + $0x8] sm:$0xff]
    %v536 = vrot.slane %v534, 7
    %v537 = vrot.slane %v535, 7
    %v538 = vsel %vm38, %v536, %v537
    %v539 = vsel %vm38, %v537, %v536
    %v540 = vsel %vm43, 0.0, %v539
    %v541 = vsel %vm44, 0.0, %v538
    %v542 = vrot.slane %v534, 1
    %v543 = vrot.slane %v535, 1
    %v544 = vsel %vm49, %v542, %v543
    %v545 = vsel %vm49, %v543, %v542
    %v546 = vsel %vm54, 0.0, %v544
    %v547 = vsel %vm55, 0.0, %v545
    %v548 = vmul.f32 %v534, 2.0
    %v549 = vmul.f32 %v535, 2.0
    %v550 = vadd.f32 %v540, %v548
    %v551 = vadd.f32 %v541, %v549
    %v552 = vadd.f32 %v550, %v546
    %v553 = vadd.f32 %v551, %v547
    %v554 = vsub.f32 %v546, %v540
    %v555 = vsub.f32 %v547, %v541
    %556 = vrot.lane.b32.xlu0 %v552, 16
    %v557 = vpop.permute.xlu0 %556
    %v558 = vsel %vm66, %v557, %v552
    %559 = vrot.lane.b32.xlu0 %v553, 16
    %v560 = vpop.permute.xlu0 %559
    %v561 = vsel %vm66, %v560, %v553
    %562 = vrot.lane.b32.xlu0 %v558, 16
    %v563 = vpop.permute.xlu0 %562
    %564 = vrot.lane.b32.xlu0 %v561, 16
    %v565 = vpop.permute.xlu0 %564
    %v566 = vsel %vm66, %v563, %v552
    %v567 = vsel %vm66, %v565, %v553
    %570 = vrot.lane.b32.xlu0 %v566, 127
    %v571 = vpop.permute.xlu0 %570
    %572 = vrot.lane.b32.xlu0 %v567, 127
    %v573 = vpop.permute.xlu0 %572
    %v576 = vsel %vm80, 0.0, %v571
    %v577 = vsel %vm80, 0.0, %v573
    %578 = vrot.lane.b32.xlu0 %v566, 113
    %v579 = vpop.permute.xlu0 %578
    %580 = vrot.lane.b32.xlu0 %v567, 113
    %v581 = vpop.permute.xlu0 %580
    %v584 = vsel %vm92, 0.0, %v579
    %v585 = vsel %vm92, 0.0, %v581
    %586 = vrot.lane.b32.xlu0 %v554, 16
    %v587 = vpop.permute.xlu0 %586
    %v588 = vsel %vm66, %v587, %v554
    %589 = vrot.lane.b32.xlu0 %v555, 16
    %v590 = vpop.permute.xlu0 %589
    %v591 = vsel %vm66, %v590, %v555
    %592 = vrot.lane.b32.xlu0 %v588, 16
    %v593 = vpop.permute.xlu0 %592
    %594 = vrot.lane.b32.xlu0 %v591, 16
    %v595 = vpop.permute.xlu0 %594
    %v596 = vsel %vm66, %v593, %v554
    %v597 = vsel %vm66, %v595, %v555
    %600 = vrot.lane.b32.xlu0 %v596, 127
    %v601 = vpop.permute.xlu0 %600
    %602 = vrot.lane.b32.xlu0 %v597, 127
    %v603 = vpop.permute.xlu0 %602
    %v606 = vsel %vm80, 0.0, %v601
    %v607 = vsel %vm80, 0.0, %v603
    %608 = vrot.lane.b32.xlu0 %v596, 113
    %v609 = vpop.permute.xlu0 %608
    %610 = vrot.lane.b32.xlu0 %v597, 113
    %v611 = vpop.permute.xlu0 %610
    %v614 = vsel %vm92, 0.0, %v609
    %v615 = vsel %vm92, 0.0, %v611
    %v616 = vsub.f32 %v576, %v584
    %v617 = vsub.f32 %v577, %v585
    %s618 = scalar_lea.vmem [#allocation5], 160
    %619 = vst.msk [vmem:[%s618] sm:$0xff] %vm133, %v616
    %620 = vst.msk [vmem:[%s618 + $0x8] sm:$0xff] %vm133, %v617
    %v621 = vmul.f32 %v554, 2.0
    %v622 = vmul.f32 %v555, 2.0
    %v623 = vadd.f32 %v614, %v621
    %v624 = vadd.f32 %v615, %v622
    %v625 = vadd.f32 %v623, %v606
    %v626 = vadd.f32 %v624, %v607
    %s627 = scalar_lea.vmem [#allocation5], 176
    %628 = vst.msk [vmem:[%s627] sm:$0xff] %vm133, %v625
    %629 = vst.msk [vmem:[%s627 + $0x8] sm:$0xff] %vm133, %v626
    // Predicated region
    $region10: #{sobel.1} parent=1 // pred_check
      _
    $region11: #{sobel.1} parent=1 // pred_check_branch
      %631 = sbr.rel (0) target = $region13
    $region12: #{sobel.1} parent=1 // pred_region
      %s633 = ssub.s32 3072, 3072
      %634 = vsyncadd [#allocation4], %s633
      %s635 = sshll.u32 [#allocation5], 4
      %s636 = int_to_ptr.vmem [resolvable:$true] %s635
      %641 = dma.vmem_to_hbm [thread:$0]  %s636, 3072, %s1, [#allocation4], 128, 128, 8
    $region13: #{sobel.1} parent=1 // pred_fallthru
      _
    // Predicated region
    $region14: #{sobel.1} parent=1 // pred_check
      _
    $region15: #{sobel.1} parent=1 // pred_check_branch
      %643 = sbr.rel (0) target = $region17
    $region16: #{sobel.1} parent=1 // pred_region
      %644 = dma.done [#allocation4], 3072
    $region17: #{sobel.1} parent=1 // pred_fallthru
      _
    %645 = vsyncpa [#allocation3], 1
    %646 = vsyncpa [#allocation4], 1

</llo_original>
